<compile_context>
chip_gen: v5e
topology: v5e:2x2
jax: 0.10.0
libtpu: 0.0.40
codegen_flags: <defaults>
</compile_context>

<pallas_src>
import functools

import jax
import jax.numpy as jnp
from jax import lax
from jax.experimental import pallas as pl
from jax.experimental.pallas import tpu as pltpu


def _basic_block_kernel(x_ref, w1_ref, w2_ref, mask_ref, o_ref, patches_scr,
                        *, K, C, Cg, Wp, pad, bias_row):
    """One grid step; channels on sublanes, lane-batched flattened spatial on lanes.

    x_ref       : (C, L)     zero-padded, flattened, batch-concatenated input
    w*_ref      : (C, rows)  im2col weights (tap-major, cin-minor, Cg-padded groups),
                             BN scale folded in, BN shift in column `bias_row`
    mask_ref    : (1, L)     1.0 at interior (valid output) lanes, 0.0 elsewhere
    o_ref       : (C, L)     output in the same padded-flat frame
    patches_scr : (rows, L)  VMEM scratch holding the im2col matrix
    """
    lanes = x_ref.shape[1]

    # One-time scratch init: zeros (dead cin rows must be 0 so their zero weight
    # columns contribute nothing), ones at the bias row so the folded-BN shift
    # rides the matmul instead of a separate lane-broadcast add.
    rid = lax.broadcasted_iota(jnp.int32, patches_scr.shape, 0)
    patches_scr[...] = jnp.where(rid == bias_row, 1.0, 0.0).astype(jnp.float32)

    x = x_ref[...]                      # (C, L)
    mask = mask_ref[...]                # (1, L), broadcasts over C

    def conv(src, w_ref):
        # im2col via static lane-rolls (XLU). For every interior output lane p the
        # rolled row holds src[p + off]; junk elsewhere is masked by the caller.
        for dy in range(K):
            for dx in range(K):
                t = dy * K + dx
                off = (dy - pad) * Wp + (dx - pad)
                if off == 0:
                    shifted = src
                else:
                    shifted = pltpu.roll(src, shift=(-off) % lanes, axis=1)
                # Cg-aligned start -> no mid-vreg RMW store.
                patches_scr[t * Cg:t * Cg + C, :] = shifted
        # Single MXU matmul per conv: (C, rows) x (rows, L); the ones row adds bias.
        return jnp.dot(w_ref[...], patches_scr[...],
                       preferred_element_type=jnp.float32)

    # block1: conv + folded BN + ReLU; mask re-imposes the zero padding conv2 needs.
    out1 = jnp.maximum(conv(x, w1_ref), 0.0) * mask
    # block2: conv + folded BN, residual add (x is the identity at interior lanes),
    # final ReLU. Mask keeps the (discarded) border lanes deterministic.
    out2 = conv(out1, w2_ref)
    o_ref[...] = (jnp.maximum(out2 + x, 0.0) * mask).astype(o_ref.dtype)


def _fold_bn(w_oihw, gamma, beta, mean, var, eps=1e-3):
    """Fold inference-mode BatchNorm into conv weight (OIHW) / bias."""
    scale = gamma / jnp.sqrt(var + eps)              # (Cout,)
    shift = beta - mean * scale                      # (Cout,)
    return w_oihw * scale[:, None, None, None], shift


def _im2col_weight(w_oihw, bias, K, C, Cg, rows, bias_row):
    """wmat[cout, t*Cg + cin] = w[cout, cin, dy, dx] (t = dy*K + dx);
    wmat[:, bias_row] = bias; all other columns zero (they face dead scratch rows)."""
    w = jnp.transpose(w_oihw, (0, 2, 3, 1)).reshape(C, K * K, C)   # (Cout, taps, Cin)
    w = jnp.pad(w, ((0, 0), (0, 0), (0, Cg - C))).reshape(C, K * K * Cg)
    w = jnp.pad(w, ((0, 0), (0, rows - K * K * Cg)))
    return w.at[:, bias_row].set(bias).astype(jnp.float32)


def _grid_steps(n):
    """2 steps on v7x (2 TensorCores/chip); 1 step on single-TC chips."""
    try:
        kind = jax.devices()[0].device_kind.lower()
    except Exception:
        kind = ""
    g = 2 if "v7" in kind else 1
    return g if (g <= n and n % g == 0) else 1


def make_basic_block(w1_oihw, g1, b1, m1, v1, w2_oihw, g2, b2, m2, v2, *, eps=1e-3):
    """Precompute folded-BN im2col weights once; return a jitted forward(x_nchw)."""
    C = int(w1_oihw.shape[0])
    K = int(w1_oihw.shape[2])
    assert K % 2 == 1, "SAME-padding path assumes odd kernel size, stride 1"
    pad = K // 2
    Cg = ((C + 7) // 8) * 8                          # sublane-aligned per-tap group
    bias_row = C if Cg > C else K * K * Cg           # a dead row (or an extra group)
    rows = K * K * Cg + (8 if Cg == C else 0)

    w1f, s1 = _fold_bn(w1_oihw, g1, b1, m1, v1, eps)
    w2f, s2 = _fold_bn(w2_oihw, g2, b2, m2, v2, eps)
    w1m = _im2col_weight(w1f, s1, K, C, Cg, rows, bias_row)
    w2m = _im2col_weight(w2f, s2, K, C, Cg, rows, bias_row)

    @jax.jit
    def forward(x_nchw):
        N, Cx, H, W = x_nchw.shape
        assert Cx == C
        Hp, Wp = H + 2 * pad, W + 2 * pad
        S = Hp * Wp
        S_pad = ((S + 127) // 128) * 128             # lane-dense slab width
        G = _grid_steps(N)
        Bstep = N // G
        Lstep = Bstep * S_pad

        # TODO(synk): when chaining BasicBlocks, keep activations in this padded-flat
        # lane-batched frame between blocks so the pad/unpack XLA ops are paid once.
        xp = jnp.pad(x_nchw.astype(jnp.float32),
                     ((0, 0), (0, 0), (pad, pad), (pad, pad)))       # (N, C, Hp, Wp)
        x_flat = jnp.pad(xp.reshape(N, C, S), ((0, 0), (0, 0), (0, S_pad - S)))
        x_lanes = jnp.transpose(x_flat, (1, 0, 2)).reshape(C, N * S_pad)

        # Interior mask over one padded-flat slab, tiled over the batch slabs of a step.
        yy = jnp.arange(Hp)[:, None]
        xx = jnp.arange(Wp)[None, :]
        interior = ((yy >= pad) & (yy < pad + H) & (xx >= pad) & (xx < pad + W))
        base_mask = jnp.pad(interior.reshape(1, S).astype(jnp.float32),
                            ((0, 0), (0, S_pad - S)))
        mask = jnp.tile(base_mask, (1, Bstep))                        # (1, Lstep)

        kernel = functools.partial(_basic_block_kernel, K=K, C=C, Cg=Cg,
                                   Wp=Wp, pad=pad, bias_row=bias_row)

        out_lanes = pl.pallas_call(
            kernel,
            out_shape=jax.ShapeDtypeStruct((C, N * S_pad), jnp.float32),
            grid_spec=pltpu.PrefetchScalarGridSpec(
                num_scalar_prefetch=0,
                grid=(G,),
                in_specs=[
                    pl.BlockSpec((C, Lstep), lambda g: (0, g)),
                    pl.BlockSpec((C, rows), lambda g: (0, 0)),
                    pl.BlockSpec((C, rows), lambda g: (0, 0)),
                    pl.BlockSpec((1, Lstep), lambda g: (0, 0)),
                ],
                out_specs=pl.BlockSpec((C, Lstep), lambda g: (0, g)),
                # Dominant VMEM term (~4*rows bytes per lane) -- trivial at these
                # sizes; re-budget if Lstep is scaled up (v7x has 64 MiB physical).
                scratch_shapes=[pltpu.VMEM((rows, Lstep), jnp.float32)],
            ),
            compiler_params=pltpu.CompilerParams(
                dimension_semantics=("parallel",)),
        )(x_lanes, w1m, w2m, mask)

        # Back to NCHW: split batch off the lanes, drop lane pad, keep the interior.
        out = out_lanes.reshape(C, N, S_pad).transpose(1, 0, 2)[:, :, :S]
        out = out.reshape(N, C, Hp, Wp)[:, :, pad:pad + H, pad:pad + W]
        return out.astype(x_nchw.dtype)

    return forward


def _reference_nchw(x, w1_oihw, b1, w2_oihw, b2):
    """Pure-JAX reference (same folded-BN semantics) for validation."""
    dn = ('NCHW', 'OIHW', 'NCHW')
    out = lax.conv_general_dilated(x, w1_oihw, (1, 1), 'SAME', dimension_numbers=dn)
    out = jnp.maximum(out + b1[None, :, None, None], 0.0)
    out = lax.conv_general_dilated(out, w2_oihw, (1, 1), 'SAME', dimension_numbers=dn)
    out = out + b2[None, :, None, None]
    return jnp.maximum(out + x, 0.0)


if __name__ == "__main__":
    # Small shapes consistent with BasicBlock(inplanes=4, kernel_size=3).
    N, C, H, W, K = 2, 4, 16, 16, 3

    key = jax.random.PRNGKey(0)
    ks = jax.random.split(key, 9)

    x_nchw = jax.random.normal(ks[0], (N, C, H, W), jnp.float32)

    # Conv weights in PyTorch (Cout, Cin, K, K); BN params per ConvBlock.
    w1_oihw = 0.1 * jax.random.normal(ks[1], (C, C, K, K), jnp.float32)
    w2_oihw = 0.1 * jax.random.normal(ks[2], (C, C, K, K), jnp.float32)
    gamma1 = 1.0 + 0.1 * jax.random.normal(ks[3], (C,), jnp.float32)
    beta1 = 0.1 * jax.random.normal(ks[4], (C,), jnp.float32)
    mean1 = 0.1 * jax.random.normal(ks[5], (C,), jnp.float32)
    var1 = jnp.abs(jax.random.normal(ks[6], (C,), jnp.float32)) + 0.5
    gamma2 = 1.0 + 0.1 * jax.random.normal(ks[7], (C,), jnp.float32)
    beta2 = 0.1 * jax.random.normal(ks[8], (C,), jnp.float32)
    mean2 = jnp.zeros((C,), jnp.float32)
    var2 = jnp.ones((C,), jnp.float32)

    forward = make_basic_block(w1_oihw, gamma1, beta1, mean1, var1,
                               w2_oihw, gamma2, beta2, mean2, var2, eps=1e-3)
    out = jax.block_until_ready(forward(x_nchw))

    # Validate against a pure-JAX reference (same inference-mode folded BN).
    w1f, s1 = _fold_bn(w1_oihw, gamma1, beta1, mean1, var1, 1e-3)
    w2f, s2 = _fold_bn(w2_oihw, gamma2, beta2, mean2, var2, 1e-3)
    ref = _reference_nchw(x_nchw, w1f, s1, w2f, s2)
    assert out.shape == (N, C, H, W)
    assert jnp.allclose(out, ref, atol=1e-3, rtol=1e-3), (
        "mismatch vs reference: max abs err = "
        f"{float(jnp.max(jnp.abs(out - ref)))}")

    print("KERNEL_OK")
</pallas_src>

<mosaic_0001>
module attributes {stable_mosaic.version = 11 : i64} {
  func.func @_basic_block_kernel(%arg0: i32, %arg1: memref<4x768xf32, #tpu.memory_space<vmem>>, %arg2: memref<4x72xf32, #tpu.memory_space<vmem>>, %arg3: memref<4x72xf32, #tpu.memory_space<vmem>>, %arg4: memref<1x768xf32, #tpu.memory_space<vmem>>, %arg5: memref<4x768xf32, #tpu.memory_space<vmem>>, %arg6: memref<72x768xf32, #tpu.memory_space<vmem>>) attributes {dimension_semantics = [#tpu.dimension_semantics<parallel>], iteration_bounds = array<i64: 1>, scalar_prefetch = 0 : i64, scratch_operands = 1 : i64, tpu.core_type = #tpu.core_type<tc>, window_params = [{transform_indices = @transform_0, window_bounds = array<i64: 4, 768>}, {pipeline_mode = #tpu.pipeline_mode<synchronous>, transform_indices = @transform_1, window_bounds = array<i64: 4, 72>}, {pipeline_mode = #tpu.pipeline_mode<synchronous>, transform_indices = @transform_2, window_bounds = array<i64: 4, 72>}, {pipeline_mode = #tpu.pipeline_mode<synchronous>, transform_indices = @transform_3, window_bounds = array<i64: 1, 768>}, {transform_indices = @transform_4, window_bounds = array<i64: 4, 768>}]} {
    %0 = tpu.iota {dimensions = array<i32: 0>} : vector<72x768xi32>
    %c4_i32 = arith.constant 4 : i32
    %1 = vector.broadcast %c4_i32 : i32 to vector<72x768xi32>
    %2 = arith.cmpi eq, %0, %1 : vector<72x768xi32>
    %cst = arith.constant 1.000000e+00 : f32
    %cst_0 = arith.constant 0.000000e+00 : f32
    %3 = vector.broadcast %cst : f32 to vector<72x768xf32>
    %4 = vector.broadcast %cst_0 : f32 to vector<72x768xf32>
    %5 = arith.select %2, %3, %4 : vector<72x768xi1>, vector<72x768xf32>
    %c0 = arith.constant 0 : index
    %c0_1 = arith.constant 0 : index
    %6 = vector.load %arg6[%c0, %c0_1] : memref<72x768xf32, #tpu.memory_space<vmem>>, vector<72x768xf32>
    tpu.vector_store %arg6[%c0, %c0_1], %5 {strides = array<i32>} : memref<72x768xf32, #tpu.memory_space<vmem>>, vector<72x768xf32>,
    %c0_2 = arith.constant 0 : index
    %c0_3 = arith.constant 0 : index
    %7 = vector.load %arg1[%c0_2, %c0_3] : memref<4x768xf32, #tpu.memory_space<vmem>>, vector<4x768xf32>
    %c0_4 = arith.constant 0 : index
    %c0_5 = arith.constant 0 : index
    %8 = vector.load %arg4[%c0_4, %c0_5] : memref<1x768xf32, #tpu.memory_space<vmem>>, vector<1x768xf32>
    %c19_i32 = arith.constant 19 : i32
    %9 = tpu.dynamic_rotate %7 by %c19_i32 dim 1 : vector<4x768xf32>, i32 -> vector<4x768xf32>
    %c0_6 = arith.constant 0 : index
    %c0_7 = arith.constant 0 : index
    %10 = vector.load %arg6[%c0_6, %c0_7] : memref<72x768xf32, #tpu.memory_space<vmem>>, vector<4x768xf32>
    tpu.vector_store %arg6[%c0_6, %c0_7], %9 {strides = array<i32>} : memref<72x768xf32, #tpu.memory_space<vmem>>, vector<4x768xf32>,
    %c18_i32 = arith.constant 18 : i32
    %11 = tpu.dynamic_rotate %7 by %c18_i32 dim 1 : vector<4x768xf32>, i32 -> vector<4x768xf32>
    %c8 = arith.constant 8 : index
    %c0_8 = arith.constant 0 : index
    %12 = vector.load %arg6[%c8, %c0_8] : memref<72x768xf32, #tpu.memory_space<vmem>>, vector<4x768xf32>
    tpu.vector_store %arg6[%c8, %c0_8], %11 {strides = array<i32>} : memref<72x768xf32, #tpu.memory_space<vmem>>, vector<4x768xf32>,
    %c17_i32 = arith.constant 17 : i32
    %13 = tpu.dynamic_rotate %7 by %c17_i32 dim 1 : vector<4x768xf32>, i32 -> vector<4x768xf32>
    %c16 = arith.constant 16 : index
    %c0_9 = arith.constant 0 : index
    %14 = vector.load %arg6[%c16, %c0_9] : memref<72x768xf32, #tpu.memory_space<vmem>>, vector<4x768xf32>
    tpu.vector_store %arg6[%c16, %c0_9], %13 {strides = array<i32>} : memref<72x768xf32, #tpu.memory_space<vmem>>, vector<4x768xf32>,
    %c1_i32 = arith.constant 1 : i32
    %15 = tpu.dynamic_rotate %7 by %c1_i32 dim 1 : vector<4x768xf32>, i32 -> vector<4x768xf32>
    %c24 = arith.constant 24 : index
    %c0_10 = arith.constant 0 : index
    %16 = vector.load %arg6[%c24, %c0_10] : memref<72x768xf32, #tpu.memory_space<vmem>>, vector<4x768xf32>
    tpu.vector_store %arg6[%c24, %c0_10], %15 {strides = array<i32>} : memref<72x768xf32, #tpu.memory_space<vmem>>, vector<4x768xf32>,
    %c32 = arith.constant 32 : index
    %c0_11 = arith.constant 0 : index
    %17 = vector.load %arg6[%c32, %c0_11] : memref<72x768xf32, #tpu.memory_space<vmem>>, vector<4x768xf32>
    tpu.vector_store %arg6[%c32, %c0_11], %7 {strides = array<i32>} : memref<72x768xf32, #tpu.memory_space<vmem>>, vector<4x768xf32>,
    %c767_i32 = arith.constant 767 : i32
    %18 = tpu.dynamic_rotate %7 by %c767_i32 dim 1 : vector<4x768xf32>, i32 -> vector<4x768xf32>
    %c40 = arith.constant 40 : index
    %c0_12 = arith.constant 0 : index
    %19 = vector.load %arg6[%c40, %c0_12] : memref<72x768xf32, #tpu.memory_space<vmem>>, vector<4x768xf32>
    tpu.vector_store %arg6[%c40, %c0_12], %18 {strides = array<i32>} : memref<72x768xf32, #tpu.memory_space<vmem>>, vector<4x768xf32>,
    %c751_i32 = arith.constant 751 : i32
    %20 = tpu.dynamic_rotate %7 by %c751_i32 dim 1 : vector<4x768xf32>, i32 -> vector<4x768xf32>
    %c48 = arith.constant 48 : index
    %c0_13 = arith.constant 0 : index
    %21 = vector.load %arg6[%c48, %c0_13] : memref<72x768xf32, #tpu.memory_space<vmem>>, vector<4x768xf32>
    tpu.vector_store %arg6[%c48, %c0_13], %20 {strides = array<i32>} : memref<72x768xf32, #tpu.memory_space<vmem>>, vector<4x768xf32>,
    %c750_i32 = arith.constant 750 : i32
    %22 = tpu.dynamic_rotate %7 by %c750_i32 dim 1 : vector<4x768xf32>, i32 -> vector<4x768xf32>
    %c56 = arith.constant 56 : index
    %c0_14 = arith.constant 0 : index
    %23 = vector.load %arg6[%c56, %c0_14] : memref<72x768xf32, #tpu.memory_space<vmem>>, vector<4x768xf32>
    tpu.vector_store %arg6[%c56, %c0_14], %22 {strides = array<i32>} : memref<72x768xf32, #tpu.memory_space<vmem>>, vector<4x768xf32>,
    %c749_i32 = arith.constant 749 : i32
    %24 = tpu.dynamic_rotate %7 by %c749_i32 dim 1 : vector<4x768xf32>, i32 -> vector<4x768xf32>
    %c64 = arith.constant 64 : index
    %c0_15 = arith.constant 0 : index
    %25 = vector.load %arg6[%c64, %c0_15] : memref<72x768xf32, #tpu.memory_space<vmem>>, vector<4x768xf32>
    tpu.vector_store %arg6[%c64, %c0_15], %24 {strides = array<i32>} : memref<72x768xf32, #tpu.memory_space<vmem>>, vector<4x768xf32>,
    %c0_16 = arith.constant 0 : index
    %c0_17 = arith.constant 0 : index
    %26 = vector.load %arg2[%c0_16, %c0_17] : memref<4x72xf32, #tpu.memory_space<vmem>>, vector<4x72xf32>
    %c0_18 = arith.constant 0 : index
    %c0_19 = arith.constant 0 : index
    %27 = vector.load %arg6[%c0_18, %c0_19] : memref<72x768xf32, #tpu.memory_space<vmem>>, vector<72x768xf32>
    %cst_20 = arith.constant dense<0.000000e+00> : vector<4x768xf32>
    %28 = tpu.matmul %26, %27, %cst_20 {dimension_numbers = #tpu.dot_dimension_numbers<[1], [0], [0], [1], [0, 0, 1, 1], [], []>} : vector<4x72xf32>, vector<72x768xf32>, vector<4x768xf32> -> vector<4x768xf32>
    %cst_21 = arith.constant 0.000000e+00 : f32
    %29 = vector.broadcast %cst_21 : f32 to vector<4x768xf32>
    %30 = arith.maximumf %28, %29 : vector<4x768xf32>
    %31 = vector.broadcast %8 : vector<1x768xf32> to vector<4x768xf32>
    %32 = arith.mulf %30, %31 : vector<4x768xf32>
    %c19_i32_22 = arith.constant 19 : i32
    %33 = tpu.dynamic_rotate %32 by %c19_i32_22 dim 1 : vector<4x768xf32>, i32 -> vector<4x768xf32>
    %c0_23 = arith.constant 0 : index
    %c0_24 = arith.constant 0 : index
    %34 = vector.load %arg6[%c0_23, %c0_24] : memref<72x768xf32, #tpu.memory_space<vmem>>, vector<4x768xf32>
    tpu.vector_store %arg6[%c0_23, %c0_24], %33 {strides = array<i32>} : memref<72x768xf32, #tpu.memory_space<vmem>>, vector<4x768xf32>,
    %c18_i32_25 = arith.constant 18 : i32
    %35 = tpu.dynamic_rotate %32 by %c18_i32_25 dim 1 : vector<4x768xf32>, i32 -> vector<4x768xf32>
    %c8_26 = arith.constant 8 : index
    %c0_27 = arith.constant 0 : index
    %36 = vector.load %arg6[%c8_26, %c0_27] : memref<72x768xf32, #tpu.memory_space<vmem>>, vector<4x768xf32>
    tpu.vector_store %arg6[%c8_26, %c0_27], %35 {strides = array<i32>} : memref<72x768xf32, #tpu.memory_space<vmem>>, vector<4x768xf32>,
    %c17_i32_28 = arith.constant 17 : i32
    %37 = tpu.dynamic_rotate %32 by %c17_i32_28 dim 1 : vector<4x768xf32>, i32 -> vector<4x768xf32>
    %c16_29 = arith.constant 16 : index
    %c0_30 = arith.constant 0 : index
    %38 = vector.load %arg6[%c16_29, %c0_30] : memref<72x768xf32, #tpu.memory_space<vmem>>, vector<4x768xf32>
    tpu.vector_store %arg6[%c16_29, %c0_30], %37 {strides = array<i32>} : memref<72x768xf32, #tpu.memory_space<vmem>>, vector<4x768xf32>,
    %c1_i32_31 = arith.constant 1 : i32
    %39 = tpu.dynamic_rotate %32 by %c1_i32_31 dim 1 : vector<4x768xf32>, i32 -> vector<4x768xf32>
    %c24_32 = arith.constant 24 : index
    %c0_33 = arith.constant 0 : index
    %40 = vector.load %arg6[%c24_32, %c0_33] : memref<72x768xf32, #tpu.memory_space<vmem>>, vector<4x768xf32>
    tpu.vector_store %arg6[%c24_32, %c0_33], %39 {strides = array<i32>} : memref<72x768xf32, #tpu.memory_space<vmem>>, vector<4x768xf32>,
    %c32_34 = arith.constant 32 : index
    %c0_35 = arith.constant 0 : index
    %41 = vector.load %arg6[%c32_34, %c0_35] : memref<72x768xf32, #tpu.memory_space<vmem>>, vector<4x768xf32>
    tpu.vector_store %arg6[%c32_34, %c0_35], %32 {strides = array<i32>} : memref<72x768xf32, #tpu.memory_space<vmem>>, vector<4x768xf32>,
    %c767_i32_36 = arith.constant 767 : i32
    %42 = tpu.dynamic_rotate %32 by %c767_i32_36 dim 1 : vector<4x768xf32>, i32 -> vector<4x768xf32>
    %c40_37 = arith.constant 40 : index
    %c0_38 = arith.constant 0 : index
    %43 = vector.load %arg6[%c40_37, %c0_38] : memref<72x768xf32, #tpu.memory_space<vmem>>, vector<4x768xf32>
    tpu.vector_store %arg6[%c40_37, %c0_38], %42 {strides = array<i32>} : memref<72x768xf32, #tpu.memory_space<vmem>>, vector<4x768xf32>,
    %c751_i32_39 = arith.constant 751 : i32
    %44 = tpu.dynamic_rotate %32 by %c751_i32_39 dim 1 : vector<4x768xf32>, i32 -> vector<4x768xf32>
    %c48_40 = arith.constant 48 : index
    %c0_41 = arith.constant 0 : index
    %45 = vector.load %arg6[%c48_40, %c0_41] : memref<72x768xf32, #tpu.memory_space<vmem>>, vector<4x768xf32>
    tpu.vector_store %arg6[%c48_40, %c0_41], %44 {strides = array<i32>} : memref<72x768xf32, #tpu.memory_space<vmem>>, vector<4x768xf32>,
    %c750_i32_42 = arith.constant 750 : i32
    %46 = tpu.dynamic_rotate %32 by %c750_i32_42 dim 1 : vector<4x768xf32>, i32 -> vector<4x768xf32>
    %c56_43 = arith.constant 56 : index
    %c0_44 = arith.constant 0 : index
    %47 = vector.load %arg6[%c56_43, %c0_44] : memref<72x768xf32, #tpu.memory_space<vmem>>, vector<4x768xf32>
    tpu.vector_store %arg6[%c56_43, %c0_44], %46 {strides = array<i32>} : memref<72x768xf32, #tpu.memory_space<vmem>>, vector<4x768xf32>,
    %c749_i32_45 = arith.constant 749 : i32
    %48 = tpu.dynamic_rotate %32 by %c749_i32_45 dim 1 : vector<4x768xf32>, i32 -> vector<4x768xf32>
    %c64_46 = arith.constant 64 : index
    %c0_47 = arith.constant 0 : index
    %49 = vector.load %arg6[%c64_46, %c0_47] : memref<72x768xf32, #tpu.memory_space<vmem>>, vector<4x768xf32>
    tpu.vector_store %arg6[%c64_46, %c0_47], %48 {strides = array<i32>} : memref<72x768xf32, #tpu.memory_space<vmem>>, vector<4x768xf32>,
    %c0_48 = arith.constant 0 : index
    %c0_49 = arith.constant 0 : index
    %50 = vector.load %arg3[%c0_48, %c0_49] : memref<4x72xf32, #tpu.memory_space<vmem>>, vector<4x72xf32>
    %c0_50 = arith.constant 0 : index
    %c0_51 = arith.constant 0 : index
    %51 = vector.load %arg6[%c0_50, %c0_51] : memref<72x768xf32, #tpu.memory_space<vmem>>, vector<72x768xf32>
    %cst_52 = arith.constant dense<0.000000e+00> : vector<4x768xf32>
    %52 = tpu.matmul %50, %51, %cst_52 {dimension_numbers = #tpu.dot_dimension_numbers<[1], [0], [0], [1], [0, 0, 1, 1], [], []>} : vector<4x72xf32>, vector<72x768xf32>, vector<4x768xf32> -> vector<4x768xf32>
    %53 = arith.addf %52, %7 : vector<4x768xf32>
    %cst_53 = arith.constant 0.000000e+00 : f32
    %54 = vector.broadcast %cst_53 : f32 to vector<4x768xf32>
    %55 = arith.maximumf %53, %54 : vector<4x768xf32>
    %56 = vector.broadcast %8 : vector<1x768xf32> to vector<4x768xf32>
    %57 = arith.mulf %55, %56 : vector<4x768xf32>
    %c0_54 = arith.constant 0 : index
    %c0_55 = arith.constant 0 : index
    %58 = vector.load %arg5[%c0_54, %c0_55] : memref<4x768xf32, #tpu.memory_space<vmem>>, vector<4x768xf32>
    tpu.vector_store %arg5[%c0_54, %c0_55], %57 {strides = array<i32>} : memref<4x768xf32, #tpu.memory_space<vmem>>, vector<4x768xf32>,
    return
  }
  func.func @transform_0(%arg0: i32) -> (i32, i32) {
    %c0_i32 = arith.constant 0 : i32
    %c0_i32_0 = arith.constant 0 : i32
    return %c0_i32, %arg0 : i32, i32
  }
  func.func @transform_1(%arg0: i32) -> (i32, i32) {
    %c0_i32 = arith.constant 0 : i32
    %c0_i32_0 = arith.constant 0 : i32
    %c0_i32_1 = arith.constant 0 : i32
    return %c0_i32, %c0_i32_0 : i32, i32
  }
  func.func @transform_2(%arg0: i32) -> (i32, i32) {
    %c0_i32 = arith.constant 0 : i32
    %c0_i32_0 = arith.constant 0 : i32
    %c0_i32_1 = arith.constant 0 : i32
    return %c0_i32, %c0_i32_0 : i32, i32
  }
  func.func @transform_3(%arg0: i32) -> (i32, i32) {
    %c0_i32 = arith.constant 0 : i32
    %c0_i32_0 = arith.constant 0 : i32
    %c0_i32_1 = arith.constant 0 : i32
    return %c0_i32, %c0_i32_0 : i32, i32
  }
  func.func @transform_4(%arg0: i32) -> (i32, i32) {
    %c0_i32 = arith.constant 0 : i32
    %c0_i32_0 = arith.constant 0 : i32
    return %c0_i32, %arg0 : i32, i32
  }
}

</mosaic_0001>

<llo_original>
// kernel: forward.1
$region0: #{forward.1}
  #allocation0 [shape = 'u32[]', space=smem, size = 0x4, offset = 0x4, fixed_abs, tag = 'smem constant byte address 0x4 - core index']
  #allocation1 [shape = 'u32[72,128]{1,0:T(1,128)}', space=vmem, size = 0x9000, scoped, tag = 'internal scratch']
  #allocation2 [shape = 'f32[72,768]{1,0:T(8,128)}', space=vmem, size = 0x36000, scoped, tag = 'scratch operand']
  %s0 = inlined_call_operand.vmem [shape: f32[4,768], index: 0, kind: input, shape index: {}]
  %s1 = inlined_call_operand.vmem [shape: f32[4,72], index: 1, kind: input, shape index: {}]
  %s2 = inlined_call_operand.vmem [shape: f32[4,72], index: 2, kind: input, shape index: {}]
  %s3 = inlined_call_operand.vmem [shape: f32[1,768], index: 3, kind: input, shape index: {}]
  %s4 = inlined_call_operand.vmem [shape: f32[4,768], index: 4, kind: output, shape index: {}]
  %s5 = sld [smem:[#allocation0]]
  $region26: #{forward.1} parent=0
    _
  %s7 = ssub.s32 1, %s5
  %s8 = scalar_select 0, %s7, %s5
  // Predicated region
  $region2: #{forward.1} parent=0 // pred_check
    _
  $region3: #{forward.1} parent=0 // pred_check_branch
    %10 = sbr.rel (0) target = $region5
  $region4: #{forward.1} parent=0 // pred_region
    _
  $region5: #{forward.1} parent=0 // pred_fallthru
    _
  // Predicated region
  $region6: #{forward.1} parent=0 // pred_check
    _
  $region7: #{forward.1} parent=0 // pred_check_branch
    %12 = sbr.rel (0) target = $region9
  $region8: #{forward.1} parent=0 // pred_region
    _
  $region9: #{forward.1} parent=0 // pred_fallthru
    _
  // Predicated region
  $region10: #{forward.1} parent=0 // pred_check
    _
  $region11: #{forward.1} parent=0 // pred_check_branch
    %14 = sbr.rel (0) target = $region13
  $region12: #{forward.1} parent=0 // pred_region
    _
  $region13: #{forward.1} parent=0 // pred_fallthru
    _
  // Predicated region
  $region14: #{forward.1} parent=0 // pred_check
    _
  $region15: #{forward.1} parent=0 // pred_check_branch
    %16 = sbr.rel (0) target = $region17
  $region16: #{forward.1} parent=0 // pred_region
    _
  $region17: #{forward.1} parent=0 // pred_fallthru
    _
  %v17 = vlaneseq
  %v18 = vshrl.u32 %v17, 7
  %v19 = vadd.s32 %v18, 8
  %v20 = vadd.s32 %v18, 16
  %v21 = vadd.s32 %v18, 24
  %v22 = vadd.s32 %v18, 32
  %v23 = vadd.s32 %v18, 40
  %v24 = vadd.s32 %v18, 48
  %v25 = vadd.s32 %v18, 56
  %v26 = vadd.s32 %v18, 64
  %vm27 = vcmp.eq.s32.totalorder %v18, 4
  %vm28 = vcmp.eq.s32.totalorder %v19, 4
  %vm29 = vcmp.eq.s32.totalorder %v20, 4
  %vm30 = vcmp.eq.s32.totalorder %v21, 4
  %vm31 = vcmp.eq.s32.totalorder %v22, 4
  %vm32 = vcmp.eq.s32.totalorder %v23, 4
  %vm33 = vcmp.eq.s32.totalorder %v24, 4
  %vm34 = vcmp.eq.s32.totalorder %v25, 4
  %vm35 = vcmp.eq.s32.totalorder %v26, 4
  %v36 = vsel %vm27, 1.0, 0.0
  %v37 = vsel %vm28, 1.0, 0.0
  %v38 = vsel %vm29, 1.0, 0.0
  %v39 = vsel %vm30, 1.0, 0.0
  %v40 = vsel %vm31, 1.0, 0.0
  %v41 = vsel %vm32, 1.0, 0.0
  %v42 = vsel %vm33, 1.0, 0.0
  %v43 = vsel %vm34, 1.0, 0.0
  %v44 = vsel %vm35, 1.0, 0.0
  %45 = vst [vmem:[#allocation2] sm:$0xff] %v36
  %46 = vst [vmem:[#allocation2 + $0x8] sm:$0xff] %v36
  %47 = vst [vmem:[#allocation2 + $0x10] sm:$0xff] %v36
  %48 = vst [vmem:[#allocation2 + $0x18] sm:$0xff] %v36
  %49 = vst [vmem:[#allocation2 + $0x20] sm:$0xff] %v36
  %50 = vst [vmem:[#allocation2 + $0x28] sm:$0xff] %v36
  %51 = vst [vmem:[#allocation2 + $0x30] sm:$0xff] %v37
  %52 = vst [vmem:[#allocation2 + $0x38] sm:$0xff] %v37
  %53 = vst [vmem:[#allocation2 + $0x40] sm:$0xff] %v37
  %54 = vst [vmem:[#allocation2 + $0x48] sm:$0xff] %v37
  %55 = vst [vmem:[#allocation2 + $0x50] sm:$0xff] %v37
  %56 = vst [vmem:[#allocation2 + $0x58] sm:$0xff] %v37
  %57 = vst [vmem:[#allocation2 + $0x60] sm:$0xff] %v38
  %58 = vst [vmem:[#allocation2 + $0x68] sm:$0xff] %v38
  %59 = vst [vmem:[#allocation2 + $0x70] sm:$0xff] %v38
  %60 = vst [vmem:[#allocation2 + $0x78] sm:$0xff] %v38
  %61 = vst [vmem:[#allocation2 + $0x80] sm:$0xff] %v38
  %62 = vst [vmem:[#allocation2 + $0x88] sm:$0xff] %v38
  %63 = vst [vmem:[#allocation2 + $0x90] sm:$0xff] %v39
  %64 = vst [vmem:[#allocation2 + $0x98] sm:$0xff] %v39
  %65 = vst [vmem:[#allocation2 + $0xa0] sm:$0xff] %v39
  %66 = vst [vmem:[#allocation2 + $0xa8] sm:$0xff] %v39
  %67 = vst [vmem:[#allocation2 + $0xb0] sm:$0xff] %v39
  %68 = vst [vmem:[#allocation2 + $0xb8] sm:$0xff] %v39
  %69 = vst [vmem:[#allocation2 + $0xc0] sm:$0xff] %v40
  %70 = vst [vmem:[#allocation2 + $0xc8] sm:$0xff] %v40
  %71 = vst [vmem:[#allocation2 + $0xd0] sm:$0xff] %v40
  %72 = vst [vmem:[#allocation2 + $0xd8] sm:$0xff] %v40
  %73 = vst [vmem:[#allocation2 + $0xe0] sm:$0xff] %v40
  %74 = vst [vmem:[#allocation2 + $0xe8] sm:$0xff] %v40
  %75 = vst [vmem:[#allocation2 + $0xf0] sm:$0xff] %v41
  %76 = vst [vmem:[#allocation2 + $0xf8] sm:$0xff] %v41
  %77 = vst [vmem:[#allocation2 + $0x100] sm:$0xff] %v41
  %78 = vst [vmem:[#allocation2 + $0x108] sm:$0xff] %v41
  %79 = vst [vmem:[#allocation2 + $0x110] sm:$0xff] %v41
  %80 = vst [vmem:[#allocation2 + $0x118] sm:$0xff] %v41
  %81 = vst [vmem:[#allocation2 + $0x120] sm:$0xff] %v42
  %82 = vst [vmem:[#allocation2 + $0x128] sm:$0xff] %v42
  %83 = vst [vmem:[#allocation2 + $0x130] sm:$0xff] %v42
  %84 = vst [vmem:[#allocation2 + $0x138] sm:$0xff] %v42
  %85 = vst [vmem:[#allocation2 + $0x140] sm:$0xff] %v42
  %86 = vst [vmem:[#allocation2 + $0x148] sm:$0xff] %v42
  %87 = vst [vmem:[#allocation2 + $0x150] sm:$0xff] %v43
  %88 = vst [vmem:[#allocation2 + $0x158] sm:$0xff] %v43
  %89 = vst [vmem:[#allocation2 + $0x160] sm:$0xff] %v43
  %90 = vst [vmem:[#allocation2 + $0x168] sm:$0xff] %v43
  %91 = vst [vmem:[#allocation2 + $0x170] sm:$0xff] %v43
  %92 = vst [vmem:[#allocation2 + $0x178] sm:$0xff] %v43
  %93 = vst [vmem:[#allocation2 + $0x180] sm:$0xff] %v44
  %94 = vst [vmem:[#allocation2 + $0x188] sm:$0xff] %v44
  %95 = vst [vmem:[#allocation2 + $0x190] sm:$0xff] %v44
  %96 = vst [vmem:[#allocation2 + $0x198] sm:$0xff] %v44
  %97 = vst [vmem:[#allocation2 + $0x1a0] sm:$0xff] %v44
  %98 = vst [vmem:[#allocation2 + $0x1a8] sm:$0xff] %v44
  %v99 = vld [vmem:[%s0] sm:$0xff]
  %v100 = vld [vmem:[%s0 + $0x8] sm:$0xff]
  %v101 = vld [vmem:[%s0 + $0x10] sm:$0xff]
  %v102 = vld [vmem:[%s3] sm:$0x3f]
  %106 = vst [vmem:[#allocation1] ss:$2 sm:$0xff] %v99
  %s107 = scalar_lea.vmem [#allocation1], 16
  %108 = vst [vmem:[%s107] ss:$2 sm:$0xff] %v100
  %s109 = scalar_lea.vmem [#allocation1], 32
  %110 = vst [vmem:[%s109] ss:$2 sm:$0xff] %v101
  %v111 = vld.sshfl [vmem:[#allocation1] sm:$0xff pattern:$0x75316420]
  %v112 = vld.sshfl [vmem:[#allocation1 + $0x8] sm:$0xff pattern:$0x75316420]
  %v113 = vld.sshfl [vmem:[#allocation1 + $0x10] sm:$0xff pattern:$0x75316420]
  %v114 = vld.sshfl [vmem:[#allocation1 + $0x18] sm:$0xff pattern:$0x75316420]
  %v115 = vld.sshfl [vmem:[#allocation1 + $0x20] sm:$0xff pattern:$0x75316420]
  %v116 = vld.sshfl [vmem:[#allocation1 + $0x28] sm:$0xff pattern:$0x75316420]
  %123 = vrot.lane.b32.xlu0 %v111, 19
  %v124 = vpop.permute.xlu0 %123
  %125 = vrot.lane.b32.xlu0 %v112, 19
  %v126 = vpop.permute.xlu0 %125
  %127 = vrot.lane.b32.xlu0 %v113, 19
  %v128 = vpop.permute.xlu0 %127
  %129 = vrot.lane.b32.xlu0 %v114, 19
  %v130 = vpop.permute.xlu0 %129
  %131 = vrot.lane.b32.xlu0 %v115, 19
  %v132 = vpop.permute.xlu0 %131
  %133 = vrot.lane.b32.xlu0 %v116, 19
  %v134 = vpop.permute.xlu0 %133
  %v135 = vlaneseq
  %v136 = vand.u32 %v135, 127
  %vm137 = vcmp.lt.s32.totalorder %v136, 19
  %v138 = vsel %vm137, %v132, %v134
  %v139 = vsel %vm137, %v130, %v132
  %v140 = vsel %vm137, %v128, %v130
  %v141 = vsel %vm137, %v126, %v128
  %v142 = vsel %vm137, %v124, %v126
  %v143 = vsel %vm137, %v134, %v124
  %144 = vst [vmem:[#allocation2] sm:$0xf] %v143
  %145 = vst [vmem:[#allocation2 + $0x8] sm:$0xf] %v142
  %146 = vst [vmem:[#allocation2 + $0x10] sm:$0xf] %v141
  %147 = vst [vmem:[#allocation2 + $0x18] sm:$0xf] %v140
  %148 = vst [vmem:[#allocation2 + $0x20] sm:$0xf] %v139
  %149 = vst [vmem:[#allocation2 + $0x28] sm:$0xf] %v138
  %150 = vst [vmem:[#allocation1] ss:$2 sm:$0xff] %v99
  %s151 = scalar_lea.vmem [#allocation1], 16
  %152 = vst [vmem:[%s151] ss:$2 sm:$0xff] %v100
  %s153 = scalar_lea.vmem [#allocation1], 32
  %154 = vst [vmem:[%s153] ss:$2 sm:$0xff] %v101
  %v155 = vld.sshfl [vmem:[#allocation1] sm:$0xff pattern:$0x75316420]
  %v156 = vld.sshfl [vmem:[#allocation1 + $0x8] sm:$0xff pattern:$0x75316420]
  %v157 = vld.sshfl [vmem:[#allocation1 + $0x10] sm:$0xff pattern:$0x75316420]
  %v158 = vld.sshfl [vmem:[#allocation1 + $0x18] sm:$0xff pattern:$0x75316420]
  %v159 = vld.sshfl [vmem:[#allocation1 + $0x20] sm:$0xff pattern:$0x75316420]
  %v160 = vld.sshfl [vmem:[#allocation1 + $0x28] sm:$0xff pattern:$0x75316420]
  %167 = vrot.lane.b32.xlu0 %v155, 18
  %v168 = vpop.permute.xlu0 %167
  %169 = vrot.lane.b32.xlu0 %v156, 18
  %v170 = vpop.permute.xlu0 %169
  %171 = vrot.lane.b32.xlu0 %v157, 18
  %v172 = vpop.permute.xlu0 %171
  %173 = vrot.lane.b32.xlu0 %v158, 18
  %v174 = vpop.permute.xlu0 %173
  %175 = vrot.lane.b32.xlu0 %v159, 18
  %v176 = vpop.permute.xlu0 %175
  %177 = vrot.lane.b32.xlu0 %v160, 18
  %v178 = vpop.permute.xlu0 %177
  %vm179 = vcmp.lt.s32.totalorder %v136, 18
  %v180 = vsel %vm179, %v176, %v178
  %v181 = vsel %vm179, %v174, %v176
  %v182 = vsel %vm179, %v172, %v174
  %v183 = vsel %vm179, %v170, %v172
  %v184 = vsel %vm179, %v168, %v170
  %v185 = vsel %vm179, %v178, %v168
  %186 = vst [vmem:[#allocation2 + $0x30] sm:$0xf] %v185
  %187 = vst [vmem:[#allocation2 + $0x38] sm:$0xf] %v184
  %188 = vst [vmem:[#allocation2 + $0x40] sm:$0xf] %v183
  %189 = vst [vmem:[#allocation2 + $0x48] sm:$0xf] %v182
  %190 = vst [vmem:[#allocation2 + $0x50] sm:$0xf] %v181
  %191 = vst [vmem:[#allocation2 + $0x58] sm:$0xf] %v180
  %192 = vst [vmem:[#allocation1] ss:$2 sm:$0xff] %v99
  %s193 = scalar_lea.vmem [#allocation1], 16
  %194 = vst [vmem:[%s193] ss:$2 sm:$0xff] %v100
  %s195 = scalar_lea.vmem [#allocation1], 32
  %196 = vst [vmem:[%s195] ss:$2 sm:$0xff] %v101
  %v197 = vld.sshfl [vmem:[#allocation1] sm:$0xff pattern:$0x75316420]
  %v198 = vld.sshfl [vmem:[#allocation1 + $0x8] sm:$0xff pattern:$0x75316420]
  %v199 = vld.sshfl [vmem:[#allocation1 + $0x10] sm:$0xff pattern:$0x75316420]
  %v200 = vld.sshfl [vmem:[#allocation1 + $0x18] sm:$0xff pattern:$0x75316420]
  %v201 = vld.sshfl [vmem:[#allocation1 + $0x20] sm:$0xff pattern:$0x75316420]
  %v202 = vld.sshfl [vmem:[#allocation1 + $0x28] sm:$0xff pattern:$0x75316420]
  %209 = vrot.lane.b32.xlu0 %v197, 17
  %v210 = vpop.permute.xlu0 %209
  %211 = vrot.lane.b32.xlu0 %v198, 17
  %v212 = vpop.permute.xlu0 %211
  %213 = vrot.lane.b32.xlu0 %v199, 17
  %v214 = vpop.permute.xlu0 %213
  %215 = vrot.lane.b32.xlu0 %v200, 17
  %v216 = vpop.permute.xlu0 %215
  %217 = vrot.lane.b32.xlu0 %v201, 17
  %v218 = vpop.permute.xlu0 %217
  %219 = vrot.lane.b32.xlu0 %v202, 17
  %v220 = vpop.permute.xlu0 %219
  %vm221 = vcmp.lt.s32.totalorder %v136, 17
  %v222 = vsel %vm221, %v218, %v220
  %v223 = vsel %vm221, %v216, %v218
  %v224 = vsel %vm221, %v214, %v216
  %v225 = vsel %vm221, %v212, %v214
  %v226 = vsel %vm221, %v210, %v212
  %v227 = vsel %vm221, %v220, %v210
  %228 = vst [vmem:[#allocation2 + $0x60] sm:$0xf] %v227
  %229 = vst [vmem:[#allocation2 + $0x68] sm:$0xf] %v226
  %230 = vst [vmem:[#allocation2 + $0x70] sm:$0xf] %v225
  %231 = vst [vmem:[#allocation2 + $0x78] sm:$0xf] %v224
  %232 = vst [vmem:[#allocation2 + $0x80] sm:$0xf] %v223
  %233 = vst [vmem:[#allocation2 + $0x88] sm:$0xf] %v222
  %234 = vst [vmem:[#allocation1] ss:$2 sm:$0xff] %v99
  %s235 = scalar_lea.vmem [#allocation1], 16
  %236 = vst [vmem:[%s235] ss:$2 sm:$0xff] %v100
  %s237 = scalar_lea.vmem [#allocation1], 32
  %238 = vst [vmem:[%s237] ss:$2 sm:$0xff] %v101
  %v239 = vld.sshfl [vmem:[#allocation1] sm:$0xff pattern:$0x75316420]
  %v240 = vld.sshfl [vmem:[#allocation1 + $0x8] sm:$0xff pattern:$0x75316420]
  %v241 = vld.sshfl [vmem:[#allocation1 + $0x10] sm:$0xff pattern:$0x75316420]
  %v242 = vld.sshfl [vmem:[#allocation1 + $0x18] sm:$0xff pattern:$0x75316420]
  %v243 = vld.sshfl [vmem:[#allocation1 + $0x20] sm:$0xff pattern:$0x75316420]
  %v244 = vld.sshfl [vmem:[#allocation1 + $0x28] sm:$0xff pattern:$0x75316420]
  %251 = vrot.lane.b32.xlu0 %v239, 1
  %v252 = vpop.permute.xlu0 %251
  %253 = vrot.lane.b32.xlu0 %v240, 1
  %v254 = vpop.permute.xlu0 %253
  %255 = vrot.lane.b32.xlu0 %v241, 1
  %v256 = vpop.permute.xlu0 %255
  %257 = vrot.lane.b32.xlu0 %v242, 1
  %v258 = vpop.permute.xlu0 %257
  %259 = vrot.lane.b32.xlu0 %v243, 1
  %v260 = vpop.permute.xlu0 %259
  %261 = vrot.lane.b32.xlu0 %v244, 1
  %v262 = vpop.permute.xlu0 %261
  %vm263 = vcmp.lt.s32.totalorder %v136, 1
  %v264 = vsel %vm263, %v260, %v262
  %v265 = vsel %vm263, %v258, %v260
  %v266 = vsel %vm263, %v256, %v258
  %v267 = vsel %vm263, %v254, %v256
  %v268 = vsel %vm263, %v252, %v254
  %v269 = vsel %vm263, %v262, %v252
  %270 = vst [vmem:[#allocation2 + $0x90] sm:$0xf] %v269
  %271 = vst [vmem:[#allocation2 + $0x98] sm:$0xf] %v268
  %272 = vst [vmem:[#allocation2 + $0xa0] sm:$0xf] %v267
  %273 = vst [vmem:[#allocation2 + $0xa8] sm:$0xf] %v266
  %274 = vst [vmem:[#allocation2 + $0xb0] sm:$0xf] %v265
  %275 = vst [vmem:[#allocation2 + $0xb8] sm:$0xf] %v264
  %276 = vst [vmem:[#allocation1] ss:$2 sm:$0xff] %v99
  %s277 = scalar_lea.vmem [#allocation1], 16
  %278 = vst [vmem:[%s277] ss:$2 sm:$0xff] %v100
  %s279 = scalar_lea.vmem [#allocation1], 32
  %280 = vst [vmem:[%s279] ss:$2 sm:$0xff] %v101
  %v281 = vld.sshfl [vmem:[#allocation1] sm:$0xff pattern:$0x75316420]
  %v282 = vld.sshfl [vmem:[#allocation1 + $0x8] sm:$0xff pattern:$0x75316420]
  %v283 = vld.sshfl [vmem:[#allocation1 + $0x10] sm:$0xff pattern:$0x75316420]
  %v284 = vld.sshfl [vmem:[#allocation1 + $0x18] sm:$0xff pattern:$0x75316420]
  %v285 = vld.sshfl [vmem:[#allocation1 + $0x20] sm:$0xff pattern:$0x75316420]
  %v286 = vld.sshfl [vmem:[#allocation1 + $0x28] sm:$0xff pattern:$0x75316420]
  %293 = vst [vmem:[#allocation2 + $0xc0] sm:$0xf] %v281
  %294 = vst [vmem:[#allocation2 + $0xc8] sm:$0xf] %v282
  %295 = vst [vmem:[#allocation2 + $0xd0] sm:$0xf] %v283
  %296 = vst [vmem:[#allocation2 + $0xd8] sm:$0xf] %v284
  %297 = vst [vmem:[#allocation2 + $0xe0] sm:$0xf] %v285
  %298 = vst [vmem:[#allocation2 + $0xe8] sm:$0xf] %v286
  %299 = vst [vmem:[#allocation1] ss:$2 sm:$0xff] %v99
  %s300 = scalar_lea.vmem [#allocation1], 16
  %301 = vst [vmem:[%s300] ss:$2 sm:$0xff] %v100
  %s302 = scalar_lea.vmem [#allocation1], 32
  %303 = vst [vmem:[%s302] ss:$2 sm:$0xff] %v101
  %v304 = vld.sshfl [vmem:[#allocation1] sm:$0xff pattern:$0x75316420]
  %v305 = vld.sshfl [vmem:[#allocation1 + $0x8] sm:$0xff pattern:$0x75316420]
  %v306 = vld.sshfl [vmem:[#allocation1 + $0x10] sm:$0xff pattern:$0x75316420]
  %v307 = vld.sshfl [vmem:[#allocation1 + $0x18] sm:$0xff pattern:$0x75316420]
  %v308 = vld.sshfl [vmem:[#allocation1 + $0x20] sm:$0xff pattern:$0x75316420]
  %v309 = vld.sshfl [vmem:[#allocation1 + $0x28] sm:$0xff pattern:$0x75316420]
  %316 = vrot.lane.b32.xlu0 %v304, 127
  %v317 = vpop.permute.xlu0 %316
  %318 = vrot.lane.b32.xlu0 %v305, 127
  %v319 = vpop.permute.xlu0 %318
  %320 = vrot.lane.b32.xlu0 %v306, 127
  %v321 = vpop.permute.xlu0 %320
  %322 = vrot.lane.b32.xlu0 %v307, 127
  %v323 = vpop.permute.xlu0 %322
  %324 = vrot.lane.b32.xlu0 %v308, 127
  %v325 = vpop.permute.xlu0 %324
  %326 = vrot.lane.b32.xlu0 %v309, 127
  %v327 = vpop.permute.xlu0 %326
  %vm328 = vcmp.lt.s32.totalorder %v136, 127
  %v329 = vsel %vm328, %v325, %v327
  %v330 = vsel %vm328, %v323, %v325
  %v331 = vsel %vm328, %v321, %v323
  %v332 = vsel %vm328, %v319, %v321
  %v333 = vsel %vm328, %v317, %v319
  %v334 = vsel %vm328, %v327, %v317
  %335 = vst [vmem:[#allocation2 + $0xf0] sm:$0xf] %v333
  %336 = vst [vmem:[#allocation2 + $0xf8] sm:$0xf] %v332
  %337 = vst [vmem:[#allocation2 + $0x100] sm:$0xf] %v331
  %338 = vst [vmem:[#allocation2 + $0x108] sm:$0xf] %v330
  %339 = vst [vmem:[#allocation2 + $0x110] sm:$0xf] %v329
  %340 = vst [vmem:[#allocation2 + $0x118] sm:$0xf] %v334
  %341 = vst [vmem:[#allocation1] ss:$2 sm:$0xff] %v99
  %s342 = scalar_lea.vmem [#allocation1], 16
  %343 = vst [vmem:[%s342] ss:$2 sm:$0xff] %v100
  %s344 = scalar_lea.vmem [#allocation1], 32
  %345 = vst [vmem:[%s344] ss:$2 sm:$0xff] %v101
  %v346 = vld.sshfl [vmem:[#allocation1] sm:$0xff pattern:$0x75316420]
  %v347 = vld.sshfl [vmem:[#allocation1 + $0x8] sm:$0xff pattern:$0x75316420]
  %v348 = vld.sshfl [vmem:[#allocation1 + $0x10] sm:$0xff pattern:$0x75316420]
  %v349 = vld.sshfl [vmem:[#allocation1 + $0x18] sm:$0xff pattern:$0x75316420]
  %v350 = vld.sshfl [vmem:[#allocation1 + $0x20] sm:$0xff pattern:$0x75316420]
  %v351 = vld.sshfl [vmem:[#allocation1 + $0x28] sm:$0xff pattern:$0x75316420]
  %358 = vrot.lane.b32.xlu0 %v346, 111
  %v359 = vpop.permute.xlu0 %358
  %360 = vrot.lane.b32.xlu0 %v347, 111
  %v361 = vpop.permute.xlu0 %360
  %362 = vrot.lane.b32.xlu0 %v348, 111
  %v363 = vpop.permute.xlu0 %362
  %364 = vrot.lane.b32.xlu0 %v349, 111
  %v365 = vpop.permute.xlu0 %364
  %366 = vrot.lane.b32.xlu0 %v350, 111
  %v367 = vpop.permute.xlu0 %366
  %368 = vrot.lane.b32.xlu0 %v351, 111
  %v369 = vpop.permute.xlu0 %368
  %vm370 = vcmp.lt.s32.totalorder %v136, 111
  %v371 = vsel %vm370, %v367, %v369
  %v372 = vsel %vm370, %v365, %v367
  %v373 = vsel %vm370, %v363, %v365
  %v374 = vsel %vm370, %v361, %v363
  %v375 = vsel %vm370, %v359, %v361
  %v376 = vsel %vm370, %v369, %v359
  %377 = vst [vmem:[#allocation2 + $0x120] sm:$0xf] %v375
  %378 = vst [vmem:[#allocation2 + $0x128] sm:$0xf] %v374
  %379 = vst [vmem:[#allocation2 + $0x130] sm:$0xf] %v373
  %380 = vst [vmem:[#allocation2 + $0x138] sm:$0xf] %v372
  %381 = vst [vmem:[#allocation2 + $0x140] sm:$0xf] %v371
  %382 = vst [vmem:[#allocation2 + $0x148] sm:$0xf] %v376
  %383 = vst [vmem:[#allocation1] ss:$2 sm:$0xff] %v99
  %s384 = scalar_lea.vmem [#allocation1], 16
  %385 = vst [vmem:[%s384] ss:$2 sm:$0xff] %v100
  %s386 = scalar_lea.vmem [#allocation1], 32
  %387 = vst [vmem:[%s386] ss:$2 sm:$0xff] %v101
  %v388 = vld.sshfl [vmem:[#allocation1] sm:$0xff pattern:$0x75316420]
  %v389 = vld.sshfl [vmem:[#allocation1 + $0x8] sm:$0xff pattern:$0x75316420]
  %v390 = vld.sshfl [vmem:[#allocation1 + $0x10] sm:$0xff pattern:$0x75316420]
  %v391 = vld.sshfl [vmem:[#allocation1 + $0x18] sm:$0xff pattern:$0x75316420]
  %v392 = vld.sshfl [vmem:[#allocation1 + $0x20] sm:$0xff pattern:$0x75316420]
  %v393 = vld.sshfl [vmem:[#allocation1 + $0x28] sm:$0xff pattern:$0x75316420]
  %400 = vrot.lane.b32.xlu0 %v388, 110
  %v401 = vpop.permute.xlu0 %400
  %402 = vrot.lane.b32.xlu0 %v389, 110
  %v403 = vpop.permute.xlu0 %402
  %404 = vrot.lane.b32.xlu0 %v390, 110
  %v405 = vpop.permute.xlu0 %404
  %406 = vrot.lane.b32.xlu0 %v391, 110
  %v407 = vpop.permute.xlu0 %406
  %408 = vrot.lane.b32.xlu0 %v392, 110
  %v409 = vpop.permute.xlu0 %408
  %410 = vrot.lane.b32.xlu0 %v393, 110
  %v411 = vpop.permute.xlu0 %410
  %vm412 = vcmp.lt.s32.totalorder %v136, 110
  %v413 = vsel %vm412, %v409, %v411
  %v414 = vsel %vm412, %v407, %v409
  %v415 = vsel %vm412, %v405, %v407
  %v416 = vsel %vm412, %v403, %v405
  %v417 = vsel %vm412, %v401, %v403
  %v418 = vsel %vm412, %v411, %v401
  %419 = vst [vmem:[#allocation2 + $0x150] sm:$0xf] %v417
  %420 = vst [vmem:[#allocation2 + $0x158] sm:$0xf] %v416
  %421 = vst [vmem:[#allocation2 + $0x160] sm:$0xf] %v415
  %422 = vst [vmem:[#allocation2 + $0x168] sm:$0xf] %v414
  %423 = vst [vmem:[#allocation2 + $0x170] sm:$0xf] %v413
  %424 = vst [vmem:[#allocation2 + $0x178] sm:$0xf] %v418
  %425 = vst [vmem:[#allocation1] ss:$2 sm:$0xff] %v99
  %s426 = scalar_lea.vmem [#allocation1], 16
  %427 = vst [vmem:[%s426] ss:$2 sm:$0xff] %v100
  %s428 = scalar_lea.vmem [#allocation1], 32
  %429 = vst [vmem:[%s428] ss:$2 sm:$0xff] %v101
  %v430 = vld.sshfl [vmem:[#allocation1] sm:$0xff pattern:$0x75316420]
  %v431 = vld.sshfl [vmem:[#allocation1 + $0x8] sm:$0xff pattern:$0x75316420]
  %v432 = vld.sshfl [vmem:[#allocation1 + $0x10] sm:$0xff pattern:$0x75316420]
  %v433 = vld.sshfl [vmem:[#allocation1 + $0x18] sm:$0xff pattern:$0x75316420]
  %v434 = vld.sshfl [vmem:[#allocation1 + $0x20] sm:$0xff pattern:$0x75316420]
  %v435 = vld.sshfl [vmem:[#allocation1 + $0x28] sm:$0xff pattern:$0x75316420]
  %442 = vrot.lane.b32.xlu0 %v430, 109
  %v443 = vpop.permute.xlu0 %442
  %444 = vrot.lane.b32.xlu0 %v431, 109
  %v445 = vpop.permute.xlu0 %444
  %446 = vrot.lane.b32.xlu0 %v432, 109
  %v447 = vpop.permute.xlu0 %446
  %448 = vrot.lane.b32.xlu0 %v433, 109
  %v449 = vpop.permute.xlu0 %448
  %450 = vrot.lane.b32.xlu0 %v434, 109
  %v451 = vpop.permute.xlu0 %450
  %452 = vrot.lane.b32.xlu0 %v435, 109
  %v453 = vpop.permute.xlu0 %452
  %vm454 = vcmp.lt.s32.totalorder %v136, 109
  %v455 = vsel %vm454, %v451, %v453
  %v456 = vsel %vm454, %v449, %v451
  %v457 = vsel %vm454, %v447, %v449
  %v458 = vsel %vm454, %v445, %v447
  %v459 = vsel %vm454, %v443, %v445
  %v460 = vsel %vm454, %v453, %v443
  %461 = vst [vmem:[#allocation2 + $0x180] sm:$0xf] %v459
  %462 = vst [vmem:[#allocation2 + $0x188] sm:$0xf] %v458
  %463 = vst [vmem:[#allocation2 + $0x190] sm:$0xf] %v457
  %464 = vst [vmem:[#allocation2 + $0x198] sm:$0xf] %v456
  %465 = vst [vmem:[#allocation2 + $0x1a0] sm:$0xf] %v455
  %466 = vst [vmem:[#allocation2 + $0x1a8] sm:$0xf] %v460
  %v467 = vld [vmem:[%s1] sm:$0xf]
  %v468 = vld [vmem:[#allocation2] sm:$0xff]
  %v469 = vld [vmem:[#allocation2 + $0x8] sm:$0xff]
  %v470 = vld [vmem:[#allocation2 + $0x10] sm:$0xff]
  %v471 = vld [vmem:[#allocation2 + $0x18] sm:$0xff]
  %v472 = vld [vmem:[#allocation2 + $0x20] sm:$0xff]
  %v473 = vld [vmem:[#allocation2 + $0x28] sm:$0xff]
  %v474 = vld [vmem:[#allocation2 + $0x30] sm:$0xff]
  %v475 = vld [vmem:[#allocation2 + $0x38] sm:$0xff]
  %v476 = vld [vmem:[#allocation2 + $0x40] sm:$0xff]
  %v477 = vld [vmem:[#allocation2 + $0x48] sm:$0xff]
  %v478 = vld [vmem:[#allocation2 + $0x50] sm:$0xff]
  %v479 = vld [vmem:[#allocation2 + $0x58] sm:$0xff]
  %v480 = vld [vmem:[#allocation2 + $0x60] sm:$0xff]
  %v481 = vld [vmem:[#allocation2 + $0x68] sm:$0xff]
  %v482 = vld [vmem:[#allocation2 + $0x70] sm:$0xff]
  %v483 = vld [vmem:[#allocation2 + $0x78] sm:$0xff]
  %v484 = vld [vmem:[#allocation2 + $0x80] sm:$0xff]
  %v485 = vld [vmem:[#allocation2 + $0x88] sm:$0xff]
  %v486 = vld [vmem:[#allocation2 + $0x90] sm:$0xff]
  %v487 = vld [vmem:[#allocation2 + $0x98] sm:$0xff]
  %v488 = vld [vmem:[#allocation2 + $0xa0] sm:$0xff]
  %v489 = vld [vmem:[#allocation2 + $0xa8] sm:$0xff]
  %v490 = vld [vmem:[#allocation2 + $0xb0] sm:$0xff]
  %v491 = vld [vmem:[#allocation2 + $0xb8] sm:$0xff]
  %v492 = vld [vmem:[#allocation2 + $0xc0] sm:$0xff]
  %v493 = vld [vmem:[#allocation2 + $0xc8] sm:$0xff]
  %v494 = vld [vmem:[#allocation2 + $0xd0] sm:$0xff]
  %v495 = vld [vmem:[#allocation2 + $0xd8] sm:$0xff]
  %v496 = vld [vmem:[#allocation2 + $0xe0] sm:$0xff]
  %v497 = vld [vmem:[#allocation2 + $0xe8] sm:$0xff]
  %v498 = vld [vmem:[#allocation2 + $0xf0] sm:$0xff]
  %v499 = vld [vmem:[#allocation2 + $0xf8] sm:$0xff]
  %v500 = vld [vmem:[#allocation2 + $0x100] sm:$0xff]
  %v501 = vld [vmem:[#allocation2 + $0x108] sm:$0xff]
  %v502 = vld [vmem:[#allocation2 + $0x110] sm:$0xff]
  %v503 = vld [vmem:[#allocation2 + $0x118] sm:$0xff]
  %v504 = vld [vmem:[#allocation2 + $0x120] sm:$0xff]
  %v505 = vld [vmem:[#allocation2 + $0x128] sm:$0xff]
  %v506 = vld [vmem:[#allocation2 + $0x130] sm:$0xff]
  %v507 = vld [vmem:[#allocation2 + $0x138] sm:$0xff]
  %v508 = vld [vmem:[#allocation2 + $0x140] sm:$0xff]
  %v509 = vld [vmem:[#allocation2 + $0x148] sm:$0xff]
  %v510 = vld [vmem:[#allocation2 + $0x150] sm:$0xff]
  %v511 = vld [vmem:[#allocation2 + $0x158] sm:$0xff]
  %v512 = vld [vmem:[#allocation2 + $0x160] sm:$0xff]
  %v513 = vld [vmem:[#allocation2 + $0x168] sm:$0xff]
  %v514 = vld [vmem:[#allocation2 + $0x170] sm:$0xff]
  %v515 = vld [vmem:[#allocation2 + $0x178] sm:$0xff]
  %v516 = vld [vmem:[#allocation2 + $0x180] sm:$0xff]
  %v517 = vld [vmem:[#allocation2 + $0x188] sm:$0xff]
  %v518 = vld [vmem:[#allocation2 + $0x190] sm:$0xff]
  %v519 = vld [vmem:[#allocation2 + $0x198] sm:$0xff]
  %v520 = vld [vmem:[#allocation2 + $0x1a0] sm:$0xff]
  %v521 = vld [vmem:[#allocation2 + $0x1a8] sm:$0xff]
  %vm522 = vcmask 588800
  %v524 = vsel %vm522, %v467, 0
  %526 = vmatpush.msra.mxu0 0.0
  %527 = vmatpush.msra.mxu0 0.0
  %528 = vmatpush.msra.mxu0 0.0
  %529 = vmatpush.msra.mxu0 0.0
  %530 = vmatpush.msra.mxu0 0.0
  %531 = vmatpush.msra.mxu0 0.0
  %532 = vmatpush.msra.mxu0 0.0
  %533 = vmatpush.msra.mxu0 %v516
  %534 = vmatpush.msra.mxu0 %v510
  %535 = vmatpush.msra.mxu0 %v504
  %536 = vmatpush.msra.mxu0 %v498
  %537 = vmatpush.msra.mxu0 %v492
  %538 = vmatpush.msra.mxu0 %v486
  %539 = vmatpush.msra.mxu0 %v480
  %540 = vmatpush.msra.mxu0 %v474
  %541 = vmatpush.msra.mxu0 %v468
  %542 = vmatmul.f32.gmra.mxu0 %v524
  %v543 = vpop.f32.mrf.mxu0
  %v544 = vadd.f32 0.0, %v543
  %545 = vdwg.mxu0
  %546 = vmatpush.msra.mxu0 0.0
  %547 = vmatpush.msra.mxu0 0.0
  %548 = vmatpush.msra.mxu0 0.0
  %549 = vmatpush.msra.mxu0 0.0
  %550 = vmatpush.msra.mxu0 0.0
  %551 = vmatpush.msra.mxu0 0.0
  %552 = vmatpush.msra.mxu0 0.0
  %553 = vmatpush.msra.mxu0 %v517
  %554 = vmatpush.msra.mxu0 %v511
  %555 = vmatpush.msra.mxu0 %v505
  %556 = vmatpush.msra.mxu0 %v499
  %557 = vmatpush.msra.mxu0 %v493
  %558 = vmatpush.msra.mxu0 %v487
  %559 = vmatpush.msra.mxu0 %v481
  %560 = vmatpush.msra.mxu0 %v475
  %561 = vmatpush.msra.mxu0 %v469
  %562 = vmatmul.f32.gmra.mxu0 %v524
  %v563 = vpop.f32.mrf.mxu0
  %v564 = vadd.f32 0.0, %v563
  %565 = vdwg.mxu0
  %566 = vmatpush.msra.mxu0 0.0
  %567 = vmatpush.msra.mxu0 0.0
  %568 = vmatpush.msra.mxu0 0.0
  %569 = vmatpush.msra.mxu0 0.0
  %570 = vmatpush.msra.mxu0 0.0
  %571 = vmatpush.msra.mxu0 0.0
  %572 = vmatpush.msra.mxu0 0.0
  %573 = vmatpush.msra.mxu0 %v518
  %574 = vmatpush.msra.mxu0 %v512
  %575 = vmatpush.msra.mxu0 %v506
  %576 = vmatpush.msra.mxu0 %v500
  %577 = vmatpush.msra.mxu0 %v494
  %578 = vmatpush.msra.mxu0 %v488
  %579 = vmatpush.msra.mxu0 %v482
  %580 = vmatpush.msra.mxu0 %v476
  %581 = vmatpush.msra.mxu0 %v470
  %582 = vmatmul.f32.gmra.mxu0 %v524
  %v583 = vpop.f32.mrf.mxu0
  %v584 = vadd.f32 0.0, %v583
  %585 = vdwg.mxu0
  %586 = vmatpush.msra.mxu0 0.0
  %587 = vmatpush.msra.mxu0 0.0
  %588 = vmatpush.msra.mxu0 0.0
  %589 = vmatpush.msra.mxu0 0.0
  %590 = vmatpush.msra.mxu0 0.0
  %591 = vmatpush.msra.mxu0 0.0
  %592 = vmatpush.msra.mxu0 0.0
  %593 = vmatpush.msra.mxu0 %v519
  %594 = vmatpush.msra.mxu0 %v513
  %595 = vmatpush.msra.mxu0 %v507
  %596 = vmatpush.msra.mxu0 %v501
  %597 = vmatpush.msra.mxu0 %v495
  %598 = vmatpush.msra.mxu0 %v489
  %599 = vmatpush.msra.mxu0 %v483
  %600 = vmatpush.msra.mxu0 %v477
  %601 = vmatpush.msra.mxu0 %v471
  %602 = vmatmul.f32.gmra.mxu0 %v524
  %v603 = vpop.f32.mrf.mxu0
  %v604 = vadd.f32 0.0, %v603
  %605 = vdwg.mxu0
  %606 = vmatpush.msra.mxu0 0.0
  %607 = vmatpush.msra.mxu0 0.0
  %608 = vmatpush.msra.mxu0 0.0
  %609 = vmatpush.msra.mxu0 0.0
  %610 = vmatpush.msra.mxu0 0.0
  %611 = vmatpush.msra.mxu0 0.0
  %612 = vmatpush.msra.mxu0 0.0
  %613 = vmatpush.msra.mxu0 %v520
  %614 = vmatpush.msra.mxu0 %v514
  %615 = vmatpush.msra.mxu0 %v508
  %616 = vmatpush.msra.mxu0 %v502
  %617 = vmatpush.msra.mxu0 %v496
  %618 = vmatpush.msra.mxu0 %v490
  %619 = vmatpush.msra.mxu0 %v484
  %620 = vmatpush.msra.mxu0 %v478
  %621 = vmatpush.msra.mxu0 %v472
  %622 = vmatmul.f32.gmra.mxu0 %v524
  %v623 = vpop.f32.mrf.mxu0
  %v624 = vadd.f32 0.0, %v623
  %625 = vdwg.mxu0
  %626 = vmatpush.msra.mxu0 0.0
  %627 = vmatpush.msra.mxu0 0.0
  %628 = vmatpush.msra.mxu0 0.0
  %629 = vmatpush.msra.mxu0 0.0
  %630 = vmatpush.msra.mxu0 0.0
  %631 = vmatpush.msra.mxu0 0.0
  %632 = vmatpush.msra.mxu0 0.0
  %633 = vmatpush.msra.mxu0 %v521
  %634 = vmatpush.msra.mxu0 %v515
  %635 = vmatpush.msra.mxu0 %v509
  %636 = vmatpush.msra.mxu0 %v503
  %637 = vmatpush.msra.mxu0 %v497
  %638 = vmatpush.msra.mxu0 %v491
  %639 = vmatpush.msra.mxu0 %v485
  %640 = vmatpush.msra.mxu0 %v479
  %641 = vmatpush.msra.mxu0 %v473
  %642 = vmatmul.f32.gmra.mxu0 %v524
  %v643 = vpop.f32.mrf.mxu0
  %v644 = vadd.f32 0.0, %v643
  %645 = vdwg.mxu0
  %v646 = vmax.f32 %v544, 0.0
  %v647 = vmax.f32 %v564, 0.0
  %v648 = vmax.f32 %v584, 0.0
  %v649 = vmax.f32 %v604, 0.0
  %v650 = vmax.f32 %v624, 0.0
  %v651 = vmax.f32 %v644, 0.0
  %v653 = vperm.slane %v102, 0
  %v654 = vperm.slane %v102, 1
  %v655 = vperm.slane %v102, 2
  %v656 = vperm.slane %v102, 3
  %v657 = vperm.slane %v102, 4
  %v658 = vperm.slane %v102, 5
  %v665 = vmul.f32 %v646, %v653
  %v666 = vmul.f32 %v647, %v654
  %v667 = vmul.f32 %v648, %v655
  %v668 = vmul.f32 %v649, %v656
  %v669 = vmul.f32 %v650, %v657
  %v670 = vmul.f32 %v651, %v658
  %671 = vrot.lane.b32.xlu0 %v665, 19
  %v672 = vpop.permute.xlu0 %671
  %673 = vrot.lane.b32.xlu0 %v666, 19
  %v674 = vpop.permute.xlu0 %673
  %675 = vrot.lane.b32.xlu0 %v667, 19
  %v676 = vpop.permute.xlu0 %675
  %677 = vrot.lane.b32.xlu0 %v668, 19
  %v678 = vpop.permute.xlu0 %677
  %679 = vrot.lane.b32.xlu0 %v669, 19
  %v680 = vpop.permute.xlu0 %679
  %681 = vrot.lane.b32.xlu0 %v670, 19
  %v682 = vpop.permute.xlu0 %681
  %v683 = vsel %vm137, %v680, %v682
  %v684 = vsel %vm137, %v678, %v680
  %v685 = vsel %vm137, %v676, %v678
  %v686 = vsel %vm137, %v674, %v676
  %v687 = vsel %vm137, %v672, %v674
  %v688 = vsel %vm137, %v682, %v672
  %689 = vst [vmem:[#allocation2] sm:$0xf] %v688
  %690 = vst [vmem:[#allocation2 + $0x8] sm:$0xf] %v687
  %691 = vst [vmem:[#allocation2 + $0x10] sm:$0xf] %v686
  %692 = vst [vmem:[#allocation2 + $0x18] sm:$0xf] %v685
  %693 = vst [vmem:[#allocation2 + $0x20] sm:$0xf] %v684
  %694 = vst [vmem:[#allocation2 + $0x28] sm:$0xf] %v683
  %695 = vrot.lane.b32.xlu0 %v665, 18
  %v696 = vpop.permute.xlu0 %695
  %697 = vrot.lane.b32.xlu0 %v666, 18
  %v698 = vpop.permute.xlu0 %697
  %699 = vrot.lane.b32.xlu0 %v667, 18
  %v700 = vpop.permute.xlu0 %699
  %701 = vrot.lane.b32.xlu0 %v668, 18
  %v702 = vpop.permute.xlu0 %701
  %703 = vrot.lane.b32.xlu0 %v669, 18
  %v704 = vpop.permute.xlu0 %703
  %705 = vrot.lane.b32.xlu0 %v670, 18
  %v706 = vpop.permute.xlu0 %705
  %v707 = vsel %vm179, %v704, %v706
  %v708 = vsel %vm179, %v702, %v704
  %v709 = vsel %vm179, %v700, %v702
  %v710 = vsel %vm179, %v698, %v700
  %v711 = vsel %vm179, %v696, %v698
  %v712 = vsel %vm179, %v706, %v696
  %713 = vst [vmem:[#allocation2 + $0x30] sm:$0xf] %v712
  %714 = vst [vmem:[#allocation2 + $0x38] sm:$0xf] %v711
  %715 = vst [vmem:[#allocation2 + $0x40] sm:$0xf] %v710
  %716 = vst [vmem:[#allocation2 + $0x48] sm:$0xf] %v709
  %717 = vst [vmem:[#allocation2 + $0x50] sm:$0xf] %v708
  %718 = vst [vmem:[#allocation2 + $0x58] sm:$0xf] %v707
  %719 = vrot.lane.b32.xlu0 %v665, 17
  %v720 = vpop.permute.xlu0 %719
  %721 = vrot.lane.b32.xlu0 %v666, 17
  %v722 = vpop.permute.xlu0 %721
  %723 = vrot.lane.b32.xlu0 %v667, 17
  %v724 = vpop.permute.xlu0 %723
  %725 = vrot.lane.b32.xlu0 %v668, 17
  %v726 = vpop.permute.xlu0 %725
  %727 = vrot.lane.b32.xlu0 %v669, 17
  %v728 = vpop.permute.xlu0 %727
  %729 = vrot.lane.b32.xlu0 %v670, 17
  %v730 = vpop.permute.xlu0 %729
  %v731 = vsel %vm221, %v728, %v730
  %v732 = vsel %vm221, %v726, %v728
  %v733 = vsel %vm221, %v724, %v726
  %v734 = vsel %vm221, %v722, %v724
  %v735 = vsel %vm221, %v720, %v722
  %v736 = vsel %vm221, %v730, %v720
  %737 = vst [vmem:[#allocation2 + $0x60] sm:$0xf] %v736
  %738 = vst [vmem:[#allocation2 + $0x68] sm:$0xf] %v735
  %739 = vst [vmem:[#allocation2 + $0x70] sm:$0xf] %v734
  %740 = vst [vmem:[#allocation2 + $0x78] sm:$0xf] %v733
  %741 = vst [vmem:[#allocation2 + $0x80] sm:$0xf] %v732
  %742 = vst [vmem:[#allocation2 + $0x88] sm:$0xf] %v731
  %743 = vrot.lane.b32.xlu0 %v665, 1
  %v744 = vpop.permute.xlu0 %743
  %745 = vrot.lane.b32.xlu0 %v666, 1
  %v746 = vpop.permute.xlu0 %745
  %747 = vrot.lane.b32.xlu0 %v667, 1
  %v748 = vpop.permute.xlu0 %747
  %749 = vrot.lane.b32.xlu0 %v668, 1
  %v750 = vpop.permute.xlu0 %749
  %751 = vrot.lane.b32.xlu0 %v669, 1
  %v752 = vpop.permute.xlu0 %751
  %753 = vrot.lane.b32.xlu0 %v670, 1
  %v754 = vpop.permute.xlu0 %753
  %v755 = vsel %vm263, %v752, %v754
  %v756 = vsel %vm263, %v750, %v752
  %v757 = vsel %vm263, %v748, %v750
  %v758 = vsel %vm263, %v746, %v748
  %v759 = vsel %vm263, %v744, %v746
  %v760 = vsel %vm263, %v754, %v744
  %761 = vst [vmem:[#allocation2 + $0x90] sm:$0xf] %v760
  %762 = vst [vmem:[#allocation2 + $0x98] sm:$0xf] %v759
  %763 = vst [vmem:[#allocation2 + $0xa0] sm:$0xf] %v758
  %764 = vst [vmem:[#allocation2 + $0xa8] sm:$0xf] %v757
  %765 = vst [vmem:[#allocation2 + $0xb0] sm:$0xf] %v756
  %766 = vst [vmem:[#allocation2 + $0xb8] sm:$0xf] %v755
  %767 = vst [vmem:[#allocation2 + $0xc0] sm:$0xf] %v665
  %768 = vst [vmem:[#allocation2 + $0xc8] sm:$0xf] %v666
  %769 = vst [vmem:[#allocation2 + $0xd0] sm:$0xf] %v667
  %770 = vst [vmem:[#allocation2 + $0xd8] sm:$0xf] %v668
  %771 = vst [vmem:[#allocation2 + $0xe0] sm:$0xf] %v669
  %772 = vst [vmem:[#allocation2 + $0xe8] sm:$0xf] %v670
  %773 = vrot.lane.b32.xlu0 %v665, 127
  %v774 = vpop.permute.xlu0 %773
  %775 = vrot.lane.b32.xlu0 %v666, 127
  %v776 = vpop.permute.xlu0 %775
  %777 = vrot.lane.b32.xlu0 %v667, 127
  %v778 = vpop.permute.xlu0 %777
  %779 = vrot.lane.b32.xlu0 %v668, 127
  %v780 = vpop.permute.xlu0 %779
  %781 = vrot.lane.b32.xlu0 %v669, 127
  %v782 = vpop.permute.xlu0 %781
  %783 = vrot.lane.b32.xlu0 %v670, 127
  %v784 = vpop.permute.xlu0 %783
  %v785 = vsel %vm328, %v782, %v784
  %v786 = vsel %vm328, %v780, %v782
  %v787 = vsel %vm328, %v778, %v780
  %v788 = vsel %vm328, %v776, %v778
  %v789 = vsel %vm328, %v774, %v776
  %v790 = vsel %vm328, %v784, %v774
  %791 = vst [vmem:[#allocation2 + $0xf0] sm:$0xf] %v789
  %792 = vst [vmem:[#allocation2 + $0xf8] sm:$0xf] %v788
  %793 = vst [vmem:[#allocation2 + $0x100] sm:$0xf] %v787
  %794 = vst [vmem:[#allocation2 + $0x108] sm:$0xf] %v786
  %795 = vst [vmem:[#allocation2 + $0x110] sm:$0xf] %v785
  %796 = vst [vmem:[#allocation2 + $0x118] sm:$0xf] %v790
  %797 = vrot.lane.b32.xlu0 %v665, 111
  %v798 = vpop.permute.xlu0 %797
  %799 = vrot.lane.b32.xlu0 %v666, 111
  %v800 = vpop.permute.xlu0 %799
  %801 = vrot.lane.b32.xlu0 %v667, 111
  %v802 = vpop.permute.xlu0 %801
  %803 = vrot.lane.b32.xlu0 %v668, 111
  %v804 = vpop.permute.xlu0 %803
  %805 = vrot.lane.b32.xlu0 %v669, 111
  %v806 = vpop.permute.xlu0 %805
  %807 = vrot.lane.b32.xlu0 %v670, 111
  %v808 = vpop.permute.xlu0 %807
  %v809 = vsel %vm370, %v806, %v808
  %v810 = vsel %vm370, %v804, %v806
  %v811 = vsel %vm370, %v802, %v804
  %v812 = vsel %vm370, %v800, %v802
  %v813 = vsel %vm370, %v798, %v800
  %v814 = vsel %vm370, %v808, %v798
  %815 = vst [vmem:[#allocation2 + $0x120] sm:$0xf] %v813
  %816 = vst [vmem:[#allocation2 + $0x128] sm:$0xf] %v812
  %817 = vst [vmem:[#allocation2 + $0x130] sm:$0xf] %v811
  %818 = vst [vmem:[#allocation2 + $0x138] sm:$0xf] %v810
  %819 = vst [vmem:[#allocation2 + $0x140] sm:$0xf] %v809
  %820 = vst [vmem:[#allocation2 + $0x148] sm:$0xf] %v814
  %821 = vrot.lane.b32.xlu0 %v665, 110
  %v822 = vpop.permute.xlu0 %821
  %823 = vrot.lane.b32.xlu0 %v666, 110
  %v824 = vpop.permute.xlu0 %823
  %825 = vrot.lane.b32.xlu0 %v667, 110
  %v826 = vpop.permute.xlu0 %825
  %827 = vrot.lane.b32.xlu0 %v668, 110
  %v828 = vpop.permute.xlu0 %827
  %829 = vrot.lane.b32.xlu0 %v669, 110
  %v830 = vpop.permute.xlu0 %829
  %831 = vrot.lane.b32.xlu0 %v670, 110
  %v832 = vpop.permute.xlu0 %831
  %v833 = vsel %vm412, %v830, %v832
  %v834 = vsel %vm412, %v828, %v830
  %v835 = vsel %vm412, %v826, %v828
  %v836 = vsel %vm412, %v824, %v826
  %v837 = vsel %vm412, %v822, %v824
  %v838 = vsel %vm412, %v832, %v822
  %839 = vst [vmem:[#allocation2 + $0x150] sm:$0xf] %v837
  %840 = vst [vmem:[#allocation2 + $0x158] sm:$0xf] %v836
  %841 = vst [vmem:[#allocation2 + $0x160] sm:$0xf] %v835
  %842 = vst [vmem:[#allocation2 + $0x168] sm:$0xf] %v834
  %843 = vst [vmem:[#allocation2 + $0x170] sm:$0xf] %v833
  %844 = vst [vmem:[#allocation2 + $0x178] sm:$0xf] %v838
  %845 = vrot.lane.b32.xlu0 %v665, 109
  %v846 = vpop.permute.xlu0 %845
  %847 = vrot.lane.b32.xlu0 %v666, 109
  %v848 = vpop.permute.xlu0 %847
  %849 = vrot.lane.b32.xlu0 %v667, 109
  %v850 = vpop.permute.xlu0 %849
  %851 = vrot.lane.b32.xlu0 %v668, 109
  %v852 = vpop.permute.xlu0 %851
  %853 = vrot.lane.b32.xlu0 %v669, 109
  %v854 = vpop.permute.xlu0 %853
  %855 = vrot.lane.b32.xlu0 %v670, 109
  %v856 = vpop.permute.xlu0 %855
  %v857 = vsel %vm454, %v854, %v856
  %v858 = vsel %vm454, %v852, %v854
  %v859 = vsel %vm454, %v850, %v852
  %v860 = vsel %vm454, %v848, %v850
  %v861 = vsel %vm454, %v846, %v848
  %v862 = vsel %vm454, %v856, %v846
  %863 = vst [vmem:[#allocation2 + $0x180] sm:$0xf] %v861
  %864 = vst [vmem:[#allocation2 + $0x188] sm:$0xf] %v860
  %865 = vst [vmem:[#allocation2 + $0x190] sm:$0xf] %v859
  %866 = vst [vmem:[#allocation2 + $0x198] sm:$0xf] %v858
  %867 = vst [vmem:[#allocation2 + $0x1a0] sm:$0xf] %v857
  %868 = vst [vmem:[#allocation2 + $0x1a8] sm:$0xf] %v862
  %v869 = vld [vmem:[%s2] sm:$0xf]
  %v870 = vld [vmem:[#allocation2] sm:$0xff]
  %v871 = vld [vmem:[#allocation2 + $0x8] sm:$0xff]
  %v872 = vld [vmem:[#allocation2 + $0x10] sm:$0xff]
  %v873 = vld [vmem:[#allocation2 + $0x18] sm:$0xff]
  %v874 = vld [vmem:[#allocation2 + $0x20] sm:$0xff]
  %v875 = vld [vmem:[#allocation2 + $0x28] sm:$0xff]
  %v876 = vld [vmem:[#allocation2 + $0x30] sm:$0xff]
  %v877 = vld [vmem:[#allocation2 + $0x38] sm:$0xff]
  %v878 = vld [vmem:[#allocation2 + $0x40] sm:$0xff]
  %v879 = vld [vmem:[#allocation2 + $0x48] sm:$0xff]
  %v880 = vld [vmem:[#allocation2 + $0x50] sm:$0xff]
  %v881 = vld [vmem:[#allocation2 + $0x58] sm:$0xff]
  %v882 = vld [vmem:[#allocation2 + $0x60] sm:$0xff]
  %v883 = vld [vmem:[#allocation2 + $0x68] sm:$0xff]
  %v884 = vld [vmem:[#allocation2 + $0x70] sm:$0xff]
  %v885 = vld [vmem:[#allocation2 + $0x78] sm:$0xff]
  %v886 = vld [vmem:[#allocation2 + $0x80] sm:$0xff]
  %v887 = vld [vmem:[#allocation2 + $0x88] sm:$0xff]
  %v888 = vld [vmem:[#allocation2 + $0x90] sm:$0xff]
  %v889 = vld [vmem:[#allocation2 + $0x98] sm:$0xff]
  %v890 = vld [vmem:[#allocation2 + $0xa0] sm:$0xff]
  %v891 = vld [vmem:[#allocation2 + $0xa8] sm:$0xff]
  %v892 = vld [vmem:[#allocation2 + $0xb0] sm:$0xff]
  %v893 = vld [vmem:[#allocation2 + $0xb8] sm:$0xff]
  %v894 = vld [vmem:[#allocation2 + $0xc0] sm:$0xff]
  %v895 = vld [vmem:[#allocation2 + $0xc8] sm:$0xff]
  %v896 = vld [vmem:[#allocation2 + $0xd0] sm:$0xff]
  %v897 = vld [vmem:[#allocation2 + $0xd8] sm:$0xff]
  %v898 = vld [vmem:[#allocation2 + $0xe0] sm:$0xff]
  %v899 = vld [vmem:[#allocation2 + $0xe8] sm:$0xff]
  %v900 = vld [vmem:[#allocation2 + $0xf0] sm:$0xff]
  %v901 = vld [vmem:[#allocation2 + $0xf8] sm:$0xff]
  %v902 = vld [vmem:[#allocation2 + $0x100] sm:$0xff]
  %v903 = vld [vmem:[#allocation2 + $0x108] sm:$0xff]
  %v904 = vld [vmem:[#allocation2 + $0x110] sm:$0xff]
  %v905 = vld [vmem:[#allocation2 + $0x118] sm:$0xff]
  %v906 = vld [vmem:[#allocation2 + $0x120] sm:$0xff]
  %v907 = vld [vmem:[#allocation2 + $0x128] sm:$0xff]
  %v908 = vld [vmem:[#allocation2 + $0x130] sm:$0xff]
  %v909 = vld [vmem:[#allocation2 + $0x138] sm:$0xff]
  %v910 = vld [vmem:[#allocation2 + $0x140] sm:$0xff]
  %v911 = vld [vmem:[#allocation2 + $0x148] sm:$0xff]
  %v912 = vld [vmem:[#allocation2 + $0x150] sm:$0xff]
  %v913 = vld [vmem:[#allocation2 + $0x158] sm:$0xff]
  %v914 = vld [vmem:[#allocation2 + $0x160] sm:$0xff]
  %v915 = vld [vmem:[#allocation2 + $0x168] sm:$0xff]
  %v916 = vld [vmem:[#allocation2 + $0x170] sm:$0xff]
  %v917 = vld [vmem:[#allocation2 + $0x178] sm:$0xff]
  %v918 = vld [vmem:[#allocation2 + $0x180] sm:$0xff]
  %v919 = vld [vmem:[#allocation2 + $0x188] sm:$0xff]
  %v920 = vld [vmem:[#allocation2 + $0x190] sm:$0xff]
  %v921 = vld [vmem:[#allocation2 + $0x198] sm:$0xff]
  %v922 = vld [vmem:[#allocation2 + $0x1a0] sm:$0xff]
  %v923 = vld [vmem:[#allocation2 + $0x1a8] sm:$0xff]
  %924 = vst [vmem:[#allocation1] ss:$2 sm:$0xff] %v99
  %s925 = scalar_lea.vmem [#allocation1], 16
  %926 = vst [vmem:[%s925] ss:$2 sm:$0xff] %v100
  %s927 = scalar_lea.vmem [#allocation1], 32
  %928 = vst [vmem:[%s927] ss:$2 sm:$0xff] %v101
  %v929 = vld.sshfl [vmem:[#allocation1] sm:$0xff pattern:$0x75316420]
  %v930 = vld.sshfl [vmem:[#allocation1 + $0x8] sm:$0xff pattern:$0x75316420]
  %v931 = vld.sshfl [vmem:[#allocation1 + $0x10] sm:$0xff pattern:$0x75316420]
  %v932 = vld.sshfl [vmem:[#allocation1 + $0x18] sm:$0xff pattern:$0x75316420]
  %v933 = vld.sshfl [vmem:[#allocation1 + $0x20] sm:$0xff pattern:$0x75316420]
  %v934 = vld.sshfl [vmem:[#allocation1 + $0x28] sm:$0xff pattern:$0x75316420]
  %v942 = vsel %vm522, %v869, 0
  %944 = vmatpush.msra.mxu0 0.0
  %945 = vmatpush.msra.mxu0 0.0
  %946 = vmatpush.msra.mxu0 0.0
  %947 = vmatpush.msra.mxu0 0.0
  %948 = vmatpush.msra.mxu0 0.0
  %949 = vmatpush.msra.mxu0 0.0
  %950 = vmatpush.msra.mxu0 0.0
  %951 = vmatpush.msra.mxu0 %v918
  %952 = vmatpush.msra.mxu0 %v912
  %953 = vmatpush.msra.mxu0 %v906
  %954 = vmatpush.msra.mxu0 %v900
  %955 = vmatpush.msra.mxu0 %v894
  %956 = vmatpush.msra.mxu0 %v888
  %957 = vmatpush.msra.mxu0 %v882
  %958 = vmatpush.msra.mxu0 %v876
  %959 = vmatpush.msra.mxu0 %v870
  %960 = vmatmul.f32.gmra.mxu0 %v942
  %v961 = vpop.f32.mrf.mxu0
  %v962 = vadd.f32 %v929, %v961
  %963 = vdwg.mxu0
  %964 = vmatpush.msra.mxu0 0.0
  %965 = vmatpush.msra.mxu0 0.0
  %966 = vmatpush.msra.mxu0 0.0
  %967 = vmatpush.msra.mxu0 0.0
  %968 = vmatpush.msra.mxu0 0.0
  %969 = vmatpush.msra.mxu0 0.0
  %970 = vmatpush.msra.mxu0 0.0
  %971 = vmatpush.msra.mxu0 %v919
  %972 = vmatpush.msra.mxu0 %v913
  %973 = vmatpush.msra.mxu0 %v907
  %974 = vmatpush.msra.mxu0 %v901
  %975 = vmatpush.msra.mxu0 %v895
  %976 = vmatpush.msra.mxu0 %v889
  %977 = vmatpush.msra.mxu0 %v883
  %978 = vmatpush.msra.mxu0 %v877
  %979 = vmatpush.msra.mxu0 %v871
  %980 = vmatmul.f32.gmra.mxu0 %v942
  %v981 = vpop.f32.mrf.mxu0
  %v982 = vadd.f32 %v930, %v981
  %983 = vdwg.mxu0
  %984 = vmatpush.msra.mxu0 0.0
  %985 = vmatpush.msra.mxu0 0.0
  %986 = vmatpush.msra.mxu0 0.0
  %987 = vmatpush.msra.mxu0 0.0
  %988 = vmatpush.msra.mxu0 0.0
  %989 = vmatpush.msra.mxu0 0.0
  %990 = vmatpush.msra.mxu0 0.0
  %991 = vmatpush.msra.mxu0 %v920
  %992 = vmatpush.msra.mxu0 %v914
  %993 = vmatpush.msra.mxu0 %v908
  %994 = vmatpush.msra.mxu0 %v902
  %995 = vmatpush.msra.mxu0 %v896
  %996 = vmatpush.msra.mxu0 %v890
  %997 = vmatpush.msra.mxu0 %v884
  %998 = vmatpush.msra.mxu0 %v878
  %999 = vmatpush.msra.mxu0 %v872
  %1000 = vmatmul.f32.gmra.mxu0 %v942
  %v1001 = vpop.f32.mrf.mxu0
  %v1002 = vadd.f32 %v931, %v1001
  %1003 = vdwg.mxu0
  %1004 = vmatpush.msra.mxu0 0.0
  %1005 = vmatpush.msra.mxu0 0.0
  %1006 = vmatpush.msra.mxu0 0.0
  %1007 = vmatpush.msra.mxu0 0.0
  %1008 = vmatpush.msra.mxu0 0.0
  %1009 = vmatpush.msra.mxu0 0.0
  %1010 = vmatpush.msra.mxu0 0.0
  %1011 = vmatpush.msra.mxu0 %v921
  %1012 = vmatpush.msra.mxu0 %v915
  %1013 = vmatpush.msra.mxu0 %v909
  %1014 = vmatpush.msra.mxu0 %v903
  %1015 = vmatpush.msra.mxu0 %v897
  %1016 = vmatpush.msra.mxu0 %v891
  %1017 = vmatpush.msra.mxu0 %v885
  %1018 = vmatpush.msra.mxu0 %v879
  %1019 = vmatpush.msra.mxu0 %v873
  %1020 = vmatmul.f32.gmra.mxu0 %v942
  %v1021 = vpop.f32.mrf.mxu0
  %v1022 = vadd.f32 %v932, %v1021
  %1023 = vdwg.mxu0
  %1024 = vmatpush.msra.mxu0 0.0
  %1025 = vmatpush.msra.mxu0 0.0
  %1026 = vmatpush.msra.mxu0 0.0
  %1027 = vmatpush.msra.mxu0 0.0
  %1028 = vmatpush.msra.mxu0 0.0
  %1029 = vmatpush.msra.mxu0 0.0
  %1030 = vmatpush.msra.mxu0 0.0
  %1031 = vmatpush.msra.mxu0 %v922
  %1032 = vmatpush.msra.mxu0 %v916
  %1033 = vmatpush.msra.mxu0 %v910
  %1034 = vmatpush.msra.mxu0 %v904
  %1035 = vmatpush.msra.mxu0 %v898
  %1036 = vmatpush.msra.mxu0 %v892
  %1037 = vmatpush.msra.mxu0 %v886
  %1038 = vmatpush.msra.mxu0 %v880
  %1039 = vmatpush.msra.mxu0 %v874
  %1040 = vmatmul.f32.gmra.mxu0 %v942
  %v1041 = vpop.f32.mrf.mxu0
  %v1042 = vadd.f32 %v933, %v1041
  %1043 = vdwg.mxu0
  %1044 = vmatpush.msra.mxu0 0.0
  %1045 = vmatpush.msra.mxu0 0.0
  %1046 = vmatpush.msra.mxu0 0.0
  %1047 = vmatpush.msra.mxu0 0.0
  %1048 = vmatpush.msra.mxu0 0.0
  %1049 = vmatpush.msra.mxu0 0.0
  %1050 = vmatpush.msra.mxu0 0.0
  %1051 = vmatpush.msra.mxu0 %v923
  %1052 = vmatpush.msra.mxu0 %v917
  %1053 = vmatpush.msra.mxu0 %v911
  %1054 = vmatpush.msra.mxu0 %v905
  %1055 = vmatpush.msra.mxu0 %v899
  %1056 = vmatpush.msra.mxu0 %v893
  %1057 = vmatpush.msra.mxu0 %v887
  %1058 = vmatpush.msra.mxu0 %v881
  %1059 = vmatpush.msra.mxu0 %v875
  %1060 = vmatmul.f32.gmra.mxu0 %v942
  %v1061 = vpop.f32.mrf.mxu0
  %v1062 = vadd.f32 %v934, %v1061
  %1063 = vdwg.mxu0
  %v1064 = vmax.f32 %v962, 0.0
  %v1065 = vmax.f32 %v982, 0.0
  %v1066 = vmax.f32 %v1002, 0.0
  %v1067 = vmax.f32 %v1022, 0.0
  %v1068 = vmax.f32 %v1042, 0.0
  %v1069 = vmax.f32 %v1062, 0.0
  %v1070 = vmul.f32 %v1064, %v653
  %v1071 = vmul.f32 %v1065, %v654
  %v1072 = vmul.f32 %v1066, %v655
  %v1073 = vmul.f32 %v1067, %v656
  %v1074 = vmul.f32 %v1068, %v657
  %v1075 = vmul.f32 %v1069, %v658
  %v1082 = vrot.slane %v1071, 4
  %v1083 = vrot.slane %v1073, 4
  %v1084 = vrot.slane %v1075, 4
  %vm1085 = vcmask 1043456
  %v1086 = vsel %vm1085, %v1070, %v1082
  %v1087 = vsel %vm1085, %v1072, %v1083
  %v1088 = vsel %vm1085, %v1074, %v1084
  %1092 = vst [vmem:[%s4] sm:$0xff] %v1086
  %1093 = vst [vmem:[%s4 + $0x8] sm:$0xff] %v1087
  %1094 = vst [vmem:[%s4 + $0x10] sm:$0xff] %v1088
  // Predicated region
  $region18: #{forward.1} parent=0 // pred_check
    _
  $region19: #{forward.1} parent=0 // pred_check_branch
    %1096 = sbr.rel (0) target = $region21
  $region20: #{forward.1} parent=0 // pred_region
    _
  $region21: #{forward.1} parent=0 // pred_fallthru
    _
  // Predicated region
  $region22: #{forward.1} parent=0 // pred_check
    _
  $region23: #{forward.1} parent=0 // pred_check_branch
    %1098 = sbr.rel (0) target = $region25
  $region24: #{forward.1} parent=0 // pred_region
    _
  $region25: #{forward.1} parent=0 // pred_fallthru
    _

</llo_original>
